<compile_context>
chip_gen: v7x
topology: tpu7x:2x2x1
jax: 0.10.0
libtpu: 0.0.40
codegen_flags: <defaults>
</compile_context>

<pallas_src>
import functools

import jax
import jax.numpy as jnp
from jax import lax
from jax.experimental import pallas as pl
from jax.experimental.pallas import tpu as pltpu


def _pwce_kernel(*refs, total_pixels, tile, has_class_weights):
    if has_class_weights:
        logits_ref, target_ref, weights_ref, cw_ref, out_ref = refs
    else:
        logits_ref, target_ref, weights_ref, out_ref = refs
        cw_ref = None

    j = pl.program_id(1)

    # Zero the per-n lane accumulator on the first pixel tile of this n.
    @pl.when(j == 0)
    def _():
        out_ref[...] = jnp.zeros_like(out_ref)

    x = logits_ref[...].astype(jnp.float32)                        # (1, C, T)
    # numerically stable logsumexp over the channel (sublane) axis
    m = jnp.max(x, axis=1, keepdims=True)                          # (1, 1, T)
    lse = jnp.log(jnp.sum(jnp.exp(x - m), axis=1, keepdims=True))  # (1, 1, T)
    mlse = m + lse                                                 # (1, 1, T)

    tgt = target_ref[...]                                          # (1, 1, T)
    ch = lax.broadcasted_iota(jnp.int32, x.shape, 1)               # channel idx
    sel = ch == tgt                                                # (1, C, T)

    # -logp per channel = (m + lse) - x ; select the target channel (optionally
    # scaled by its class weight) and reduce over channels in a single pass.
    nll = mlse - x                                                 # (1, C, T)
    if has_class_weights:
        per_c = jnp.where(sel, cw_ref[...] * nll, 0.0)             # (1, C, T)
    else:
        per_c = jnp.where(sel, nll, 0.0)                           # (1, C, T)

    w = weights_ref[...].astype(jnp.float32)                       # (1, 1, T)
    loss = w * jnp.sum(per_c, axis=1, keepdims=True)               # (1, 1, T)

    # Mask out-of-range lanes of the (possibly ragged) final tile.
    if total_pixels % tile != 0:
        lane = lax.broadcasted_iota(jnp.int32, loss.shape, 2)
        loss = jnp.where(lane < (total_pixels - j * tile), loss, 0.0)

    out_ref[...] += loss


def _choose_tile(C, n_pixels, logit_itemsize, max_tile=65536,
                 vmem_budget_bytes=16 * 1024 * 1024):
    """Largest 128-multiple pixel tile whose double-buffered working set fits."""
    # bytes/pixel resident per grid step (x2 for double buffering):
    #   logits C*itemsize, int32 target, f32 pixel weight, f32 output lane
    per_pixel = 2 * (C * logit_itemsize + 4 + 4 + 4)
    tile = max_tile
    while tile > 128 and per_pixel * tile > vmem_budget_bytes:
        tile //= 2
    tile = min(tile, ((n_pixels + 127) // 128) * 128)
    return max(128, (tile // 128) * 128)


def pixelwise_cross_entropy_loss(logits, target, weights, class_weights=None,
                                 tile=None):
    """logits: (N,C,D,H,W); target: (N,D,H,W) int; weights: (N,D,H,W) float."""
    N, C, D, H, W = logits.shape
    assert target.shape == (N, D, H, W)
    assert weights.shape == target.shape
    S = D * H * W

    has_cw = class_weights is not None

    # Free reshapes only (no HBM transpose / copy of the logits tensor).
    lg = logits.reshape(N, C, S)
    tg = target.astype(jnp.int32).reshape(N, 1, S)
    wt = weights.astype(jnp.float32).reshape(N, 1, S)

    if tile is None:
        tile = _choose_tile(C, S, logits.dtype.itemsize)
    assert tile % 128 == 0
    n_tiles = pl.cdiv(S, tile)

    vmem_needed = 2 * tile * (C * logits.dtype.itemsize + 12) + (2 << 20)
    vmem_limit = int(min(max(vmem_needed, 32 * 1024 * 1024), 48 * 1024 * 1024))

    kernel = functools.partial(_pwce_kernel, total_pixels=S, tile=tile,
                               has_class_weights=has_cw)

    in_specs = [
        pl.BlockSpec((1, C, tile), lambda n, j: (n, 0, j)),   # logits
        pl.BlockSpec((1, 1, tile), lambda n, j: (n, 0, j)),   # target
        pl.BlockSpec((1, 1, tile), lambda n, j: (n, 0, j)),   # pixel weights
    ]
    operands = [lg, tg, wt]
    if has_cw:
        cw = class_weights.astype(jnp.float32).reshape(1, C, 1)
        in_specs.append(pl.BlockSpec((1, C, 1), lambda n, j: (0, 0, 0)))
        operands.append(cw)

    partial_sums = pl.pallas_call(
        kernel,
        out_shape=jax.ShapeDtypeStruct((N, 1, tile), jnp.float32),
        grid_spec=pltpu.PrefetchScalarGridSpec(
            num_scalar_prefetch=0,
            grid=(N, n_tiles),
            in_specs=in_specs,
            out_specs=pl.BlockSpec((1, 1, tile), lambda n, j: (n, 0, 0)),
        ),
        compiler_params=pltpu.CompilerParams(
            dimension_semantics=("parallel", "arbitrary"),
            vmem_limit_bytes=vmem_limit),
    )(*operands)

    # `.mean()` over the full N*C*D*H*W (mostly-zero) result tensor,
    # matching the pytorch-3dunet semantics.
    return jnp.sum(partial_sums) / (N * C * D * H * W)


def _reference(logits, target, weights, class_weights):
    logp = jax.nn.log_softmax(logits.astype(jnp.float32), axis=1)
    onehot = jax.nn.one_hot(target, logits.shape[1], axis=1, dtype=jnp.float32)
    w = weights[:, None].astype(jnp.float32) * class_weights.reshape(1, -1, 1, 1, 1)
    return jnp.mean(-w * onehot * logp)


if __name__ == "__main__":
    key = jax.random.PRNGKey(0)
    k1, k2, k3 = jax.random.split(key, 3)

    # Main check: explicit class weights, pixel count divisible by the tile.
    N, C, D, H, W = 2, 4, 4, 16, 16
    logits = jax.random.normal(k1, (N, C, D, H, W), dtype=jnp.float32)
    target = jax.random.randint(k2, (N, D, H, W), 0, C, dtype=jnp.int32)
    weights = jax.random.uniform(k3, (N, D, H, W), dtype=jnp.float32)
    class_weights = jnp.array([1.0, 0.5, 2.0, 1.5], dtype=jnp.float32)

    loss = jax.block_until_ready(
        pixelwise_cross_entropy_loss(logits, target, weights, class_weights))
    ref = _reference(logits, target, weights, class_weights)
    assert jnp.allclose(loss, ref, rtol=1e-5, atol=1e-6), (loss, ref)

    # Ragged check: pixel count not a multiple of the tile, class_weights=None
    # (exercises the specialised no-class-weights kernel and the lane mask).
    N2, C2, D2, H2, W2 = 2, 3, 2, 16, 20          # S = 640, tile = 512 -> ragged
    k4, k5, k6 = jax.random.split(k1, 3)
    lg2 = jax.random.normal(k4, (N2, C2, D2, H2, W2), dtype=jnp.float32)
    tg2 = jax.random.randint(k5, (N2, D2, H2, W2), 0, C2, dtype=jnp.int32)
    wt2 = jax.random.uniform(k6, (N2, D2, H2, W2), dtype=jnp.float32)
    loss2 = jax.block_until_ready(
        pixelwise_cross_entropy_loss(lg2, tg2, wt2, None, tile=512))
    ref2 = _reference(lg2, tg2, wt2, jnp.ones((C2,), jnp.float32))
    assert jnp.allclose(loss2, ref2, rtol=1e-5, atol=1e-6), (loss2, ref2)

    # bf16 logits check (class weights, divisible tile).
    lg3 = logits.astype(jnp.bfloat16)
    loss3 = jax.block_until_ready(
        pixelwise_cross_entropy_loss(lg3, target, weights, class_weights))
    ref3 = _reference(lg3, target, weights, class_weights)
    assert jnp.allclose(loss3, ref3, rtol=2e-2, atol=1e-4), (loss3, ref3)

    print("KERNEL_OK")
</pallas_src>

<mosaic_0001>
module attributes {stable_mosaic.version = 11 : i64} {
  func.func @_pwce_kernel(%arg0: i32, %arg1: i32, %arg2: memref<1x4x1024xf32, #tpu.memory_space<vmem>>, %arg3: memref<1x1x1024xi32, #tpu.memory_space<vmem>>, %arg4: memref<1x1x1024xf32, #tpu.memory_space<vmem>>, %arg5: memref<1x4x1xf32, #tpu.memory_space<vmem>>, %arg6: memref<1x1x1024xf32, #tpu.memory_space<vmem>>) attributes {dimension_semantics = [#tpu.dimension_semantics<parallel>, #tpu.dimension_semantics<arbitrary>], iteration_bounds = array<i64: 2, 1>, scalar_prefetch = 0 : i64, scratch_operands = 0 : i64, tpu.core_type = #tpu.core_type<tc>, window_params = [{transform_indices = @transform_0, window_bounds = array<i64: 1, 4, 1024>}, {transform_indices = @transform_1, window_bounds = array<i64: 1, 1, 1024>}, {transform_indices = @transform_2, window_bounds = array<i64: 1, 1, 1024>}, {pipeline_mode = #tpu.pipeline_mode<synchronous>, transform_indices = @transform_3, window_bounds = array<i64: 1, 4, 1>}, {transform_indices = @transform_4, window_bounds = array<i64: 1, 1, 1024>}]} {
    %c0_i32 = arith.constant 0 : i32
    %0 = arith.cmpi eq, %arg1, %c0_i32 : i32
    %1 = arith.extui %0 : i1 to i32
    %c0_i32_0 = arith.constant 0 : i32
    %2 = arith.cmpi ne, %1, %c0_i32_0 : i32
    scf.if %2 {
      %cst_21 = arith.constant 0.000000e+00 : f32
      %31 = vector.broadcast %cst_21 : f32 to vector<1x1x1024xf32>
      %c0_22 = arith.constant 0 : index
      %c0_23 = arith.constant 0 : index
      %c0_24 = arith.constant 0 : index
      %32 = vector.load %arg6[%c0_22, %c0_23, %c0_24] : memref<1x1x1024xf32, #tpu.memory_space<vmem>>, vector<1x1x1024xf32>
      tpu.vector_store %arg6[%c0_22, %c0_23, %c0_24], %31 {strides = array<i32>} : memref<1x1x1024xf32, #tpu.memory_space<vmem>>, vector<1x1x1024xf32>,
    } else {
    }
    %c0 = arith.constant 0 : index
    %c0_1 = arith.constant 0 : index
    %c0_2 = arith.constant 0 : index
    %3 = vector.load %arg2[%c0, %c0_1, %c0_2] : memref<1x4x1024xf32, #tpu.memory_space<vmem>>, vector<1x4x1024xf32>
    %cst = arith.constant dense<0xFF800000> : vector<1x1024xf32>
    %4 = vector.multi_reduction <maximumf>, %3, %cst [1] : vector<1x4x1024xf32> to vector<1x1024xf32>
    %5 = vector.shape_cast %4 : vector<1x1024xf32> to vector<1x1x1024xf32>
    %6 = vector.broadcast %5 : vector<1x1x1024xf32> to vector<1x4x1024xf32>
    %7 = arith.subf %3, %6 : vector<1x4x1024xf32>
    %8 = math.exp %7 : vector<1x4x1024xf32>
    %cst_3 = arith.constant dense<0.000000e+00> : vector<1x1024xf32>
    %9 = vector.multi_reduction <add>, %8, %cst_3 [1] : vector<1x4x1024xf32> to vector<1x1024xf32>
    %10 = vector.shape_cast %9 : vector<1x1024xf32> to vector<1x1x1024xf32>
    %11 = math.log %10 : vector<1x1x1024xf32>
    %12 = arith.addf %5, %11 : vector<1x1x1024xf32>
    %c0_4 = arith.constant 0 : index
    %c0_5 = arith.constant 0 : index
    %c0_6 = arith.constant 0 : index
    %13 = vector.load %arg3[%c0_4, %c0_5, %c0_6] : memref<1x1x1024xi32, #tpu.memory_space<vmem>>, vector<1x1x1024xi32>
    %14 = tpu.iota {dimensions = array<i32: 1>} : vector<1x4x1024xi32>
    %15 = vector.broadcast %13 : vector<1x1x1024xi32> to vector<1x4x1024xi32>
    %16 = arith.cmpi eq, %14, %15 : vector<1x4x1024xi32>
    %17 = vector.broadcast %12 : vector<1x1x1024xf32> to vector<1x4x1024xf32>
    %18 = arith.subf %17, %3 : vector<1x4x1024xf32>
    %c0_7 = arith.constant 0 : index
    %c0_8 = arith.constant 0 : index
    %c0_9 = arith.constant 0 : index
    %19 = vector.load %arg5[%c0_7, %c0_8, %c0_9] : memref<1x4x1xf32, #tpu.memory_space<vmem>>, vector<1x4x1xf32>
    %20 = vector.broadcast %19 : vector<1x4x1xf32> to vector<1x4x1024xf32>
    %21 = arith.mulf %20, %18 : vector<1x4x1024xf32>
    %cst_10 = arith.constant 0.000000e+00 : f32
    %22 = vector.broadcast %cst_10 : f32 to vector<1x4x1024xf32>
    %23 = arith.select %16, %21, %22 : vector<1x4x1024xi1>, vector<1x4x1024xf32>
    %c0_11 = arith.constant 0 : index
    %c0_12 = arith.constant 0 : index
    %c0_13 = arith.constant 0 : index
    %24 = vector.load %arg4[%c0_11, %c0_12, %c0_13] : memref<1x1x1024xf32, #tpu.memory_space<vmem>>, vector<1x1x1024xf32>
    %cst_14 = arith.constant dense<0.000000e+00> : vector<1x1024xf32>
    %25 = vector.multi_reduction <add>, %23, %cst_14 [1] : vector<1x4x1024xf32> to vector<1x1024xf32>
    %26 = vector.shape_cast %25 : vector<1x1024xf32> to vector<1x1x1024xf32>
    %27 = arith.mulf %24, %26 : vector<1x1x1024xf32>
    %c0_15 = arith.constant 0 : index
    %c0_16 = arith.constant 0 : index
    %c0_17 = arith.constant 0 : index
    %28 = vector.load %arg6[%c0_15, %c0_16, %c0_17] : memref<1x1x1024xf32, #tpu.memory_space<vmem>>, vector<1x1x1024xf32>
    %29 = arith.addf %28, %27 : vector<1x1x1024xf32>
    %c0_18 = arith.constant 0 : index
    %c0_19 = arith.constant 0 : index
    %c0_20 = arith.constant 0 : index
    %30 = vector.load %arg6[%c0_18, %c0_19, %c0_20] : memref<1x1x1024xf32, #tpu.memory_space<vmem>>, vector<1x1x1024xf32>
    tpu.vector_store %arg6[%c0_18, %c0_19, %c0_20], %29 {strides = array<i32>} : memref<1x1x1024xf32, #tpu.memory_space<vmem>>, vector<1x1x1024xf32>,
    return
  }
  func.func @transform_0(%arg0: i32, %arg1: i32) -> (i32, i32, i32) {
    %c0_i32 = arith.constant 0 : i32
    %c0_i32_0 = arith.constant 0 : i32
    return %arg0, %c0_i32, %arg1 : i32, i32, i32
  }
  func.func @transform_1(%arg0: i32, %arg1: i32) -> (i32, i32, i32) {
    %c0_i32 = arith.constant 0 : i32
    %c0_i32_0 = arith.constant 0 : i32
    return %arg0, %c0_i32, %arg1 : i32, i32, i32
  }
  func.func @transform_2(%arg0: i32, %arg1: i32) -> (i32, i32, i32) {
    %c0_i32 = arith.constant 0 : i32
    %c0_i32_0 = arith.constant 0 : i32
    return %arg0, %c0_i32, %arg1 : i32, i32, i32
  }
  func.func @transform_3(%arg0: i32, %arg1: i32) -> (i32, i32, i32) {
    %c0_i32 = arith.constant 0 : i32
    %c0_i32_0 = arith.constant 0 : i32
    %c0_i32_1 = arith.constant 0 : i32
    %c0_i32_2 = arith.constant 0 : i32
    return %c0_i32, %c0_i32_0, %c0_i32_1 : i32, i32, i32
  }
  func.func @transform_4(%arg0: i32, %arg1: i32) -> (i32, i32, i32) {
    %c0_i32 = arith.constant 0 : i32
    %c0_i32_0 = arith.constant 0 : i32
    %c0_i32_1 = arith.constant 0 : i32
    return %arg0, %c0_i32, %c0_i32_0 : i32, i32, i32
  }
}

</mosaic_0001>

<llo_original>
// kernel: tpu_custom_call.1
$region0: #{tpu_custom_call.1}
  #allocation0 [shape = 'u32[]', space=smem, size = 0x4, offset = 0x4, fixed_abs, tag = 'smem constant byte address 0x4 - core index']
  #allocation1 [shape = 'u32[144,128]{1,0:T(1,128)}', space=vmem, size = 0x12000, scoped, tag = 'internal scratch']
  %s0 = inlined_call_operand.hbm [shape: f32[2,4,1024], index: 0, kind: input, shape index: {}]
  %s1 = inlined_call_operand.hbm [shape: s32[2,1,1024], index: 1, kind: input, shape index: {}]
  %s2 = inlined_call_operand.hbm [shape: f32[2,1,1024], index: 2, kind: input, shape index: {}]
  %s3 = inlined_call_operand.vmem [shape: f32[1,4,1], index: 3, kind: input, shape index: {}]
  %s4 = inlined_call_operand.hbm [shape: f32[2,1,1024], index: 4, kind: output, shape index: {}]
  %s5 = sld [smem:[#allocation0]]
  $region65: #{tpu_custom_call.1} parent=0
    _
  %s7 = ssub.s32 1, %s5
  %s8 = scalar_select 0, %s7, %s5
  $region1: #{tpu_custom_call.1} parent=0
    #allocation2 [shape = 'u8[32768]{0}', space=vmem, size = 0x8000, scoped, tag = 'input window, operand 0']
    #allocation3 [shape = 's32[2]{0}', space=sflag, size = 0x8, scoped, tag = 'scoped memory for tpu_custom_call.1']
    #allocation4 [shape = 's32[2]{0}', space=sflag, size = 0x8, scoped, tag = 'scoped memory for tpu_custom_call.1']
    #allocation5 [shape = 'u8[8192]{0}', space=vmem, size = 0x2000, scoped, tag = 'input window, operand 1']
    #allocation6 [shape = 's32[2]{0}', space=sflag, size = 0x8, scoped, tag = 'scoped memory for tpu_custom_call.1']
    #allocation7 [shape = 'u8[8192]{0}', space=vmem, size = 0x2000, scoped, tag = 'input window, operand 2']
    #allocation8 [shape = 'u8[8192]{0}', space=vmem, size = 0x2000, scoped, tag = 'output window, operand 0']
    %9 = vsyncpa [#allocation3], 0
    %s10 = scalar_lea.sflag [#allocation3], 1
    %11 = vsyncpa %s10, 0
    %12 = vsyncpa [#allocation6], 0
    %s13 = scalar_lea.sflag [#allocation6], 1
    %14 = vsyncpa %s13, 0
    %15 = vsyncpa [#allocation4], 0
    %s16 = scalar_lea.sflag [#allocation4], 1
    %17 = vsyncpa %s16, 0
    loop: start=0, step=1, limit=4
    $region2: #{tpu_custom_call.1} parent=1 // loop_pre_header
      _
    $region3: #{tpu_custom_call.1} parent=1 // loop_header
      %s19 = sphi 0, %s23
      %p20 = scmp.ge.s32.totalorder %s19, 4
      %s26 = sphi 0, %s38
      %s27 = sphi 0, %s34
      %s28 = sphi 0, %s26
      %s29 = sphi 0, %s27
      %s30 = sphi 0, %s28
      %s31 = sphi 0, %s29
      %s43 = sphi 0, %s45
      %s46 = sphi 0, %s43
      %s47 = sphi 0, %s46
      %s63 = sphi 0, %s47
      %s71 = sphi 0, %s73
      %s74 = sphi 0, %s71
      %s75 = sphi 0, %s74
      %s91 = sphi 0, %s75
      %s99 = sphi 0, %s101
      %s102 = sphi 0, %s99
      %s103 = sphi 0, %s102
      %s119 = sphi 0, %s103
      %s123 = sphi 0, %s123
      %s125 = sphi 0, %s123
      %s126 = sphi 0, %s125
      %s140 = sphi 0, %s126
      %s146 = sphi 0, %s148
      %s149 = sphi 0, %s146
      %s150 = sphi 0, %s149
      %s166 = sphi 0, %s150
    $region4: #{tpu_custom_call.1} parent=1 // loop_header_branch
      %22 = sbr.rel (%p20) target = $region8
    $region5: #{tpu_custom_call.1} parent=1 // loop_body
      %s24 = ssub.s32 %s19, 1
      %s25 = ssub.s32 %s19, 2
      %s32 = sadd.s32 1, %s27
      %p33 = scmp.ge.s32.totalorder %s32, 1
      %s34 = scalar_select %p33, 0, %s32
      %s35 = sadd.s32 1, %s26
      %s36 = scalar_select %p33, %s35, %s26
      %p37 = scmp.ge.s32.totalorder %s36, 2
      %s38 = scalar_select %p37, 0, %s36
      %s39 = ssub.s32 %s26, %s38
      %s40 = ssub.s32 %s27, %s34
      %s41 = sor.u32 %s39, %s40
      %p42 = scmp.eq.s32.totalorder %s41, 0
      %s44 = sadd.s32 %s43, 1
      %s45 = scalar_select %p42, %s43, %s44
      %p48 = pneg %p42
      %p49 = scmp.eq.s32.totalorder %s19, 1
      %p50 = por %p48, %p49
      %p51 = scmp.ne.s32.totalorder %s43, %s46
      %p52 = scmp.eq.s32.totalorder %s19, 0
      %p53 = por %p51, %p52
      %p54 = scmp.ne.s32.totalorder %s43, %s46
      %p55 = scmp.eq.s32.totalorder %s24, 1
      %p56 = por %p54, %p55
      %p57 = scmp.ne.s32.totalorder %s46, %s47
      %p58 = scmp.eq.s32.totalorder %s24, 0
      %p59 = por %p57, %p58
      %p60 = scmp.ne.s32.totalorder %s46, %s47
      %p61 = scmp.eq.s32.totalorder %s25, 1
      %p62 = por %p60, %p61
      %p64 = scmp.ne.s32.totalorder %s47, %s63
      %p65 = scmp.eq.s32.totalorder %s25, 0
      %p66 = por %p64, %p65
      %s67 = ssub.s32 %s26, %s38
      %s68 = ssub.s32 %s27, %s34
      %s69 = sor.u32 %s67, %s68
      %p70 = scmp.eq.s32.totalorder %s69, 0
      %s72 = sadd.s32 %s71, 1
      %s73 = scalar_select %p70, %s71, %s72
      %p76 = pneg %p70
      %p77 = scmp.eq.s32.totalorder %s19, 1
      %p78 = por %p76, %p77
      %p79 = scmp.ne.s32.totalorder %s71, %s74
      %p80 = scmp.eq.s32.totalorder %s19, 0
      %p81 = por %p79, %p80
      %p82 = scmp.ne.s32.totalorder %s71, %s74
      %p83 = scmp.eq.s32.totalorder %s24, 1
      %p84 = por %p82, %p83
      %p85 = scmp.ne.s32.totalorder %s74, %s75
      %p86 = scmp.eq.s32.totalorder %s24, 0
      %p87 = por %p85, %p86
      %p88 = scmp.ne.s32.totalorder %s74, %s75
      %p89 = scmp.eq.s32.totalorder %s25, 1
      %p90 = por %p88, %p89
      %p92 = scmp.ne.s32.totalorder %s75, %s91
      %p93 = scmp.eq.s32.totalorder %s25, 0
      %p94 = por %p92, %p93
      %s95 = ssub.s32 %s26, %s38
      %s96 = ssub.s32 %s27, %s34
      %s97 = sor.u32 %s95, %s96
      %p98 = scmp.eq.s32.totalorder %s97, 0
      %s100 = sadd.s32 %s99, 1
      %s101 = scalar_select %p98, %s99, %s100
      %p104 = pneg %p98
      %p105 = scmp.eq.s32.totalorder %s19, 1
      %p106 = por %p104, %p105
      %p107 = scmp.ne.s32.totalorder %s99, %s102
      %p108 = scmp.eq.s32.totalorder %s19, 0
      %p109 = por %p107, %p108
      %p110 = scmp.ne.s32.totalorder %s99, %s102
      %p111 = scmp.eq.s32.totalorder %s24, 1
      %p112 = por %p110, %p111
      %p113 = scmp.ne.s32.totalorder %s102, %s103
      %p114 = scmp.eq.s32.totalorder %s24, 0
      %p115 = por %p113, %p114
      %p116 = scmp.ne.s32.totalorder %s102, %s103
      %p117 = scmp.eq.s32.totalorder %s25, 1
      %p118 = por %p116, %p117
      %p120 = scmp.ne.s32.totalorder %s103, %s119
      %p121 = scmp.eq.s32.totalorder %s25, 0
      %p122 = por %p120, %p121
      %s124 = sadd.s32 %s123, 1
      %p127 = scmp.eq.s32.totalorder %s19, 1
      %p128 = scmp.ne.s32.totalorder %s123, %s125
      %p129 = scmp.eq.s32.totalorder %s19, 0
      %p130 = por %p128, %p129
      %p131 = scmp.ne.s32.totalorder %s123, %s125
      %p132 = scmp.eq.s32.totalorder %s24, 1
      %p133 = por %p131, %p132
      %p134 = scmp.ne.s32.totalorder %s125, %s126
      %p135 = scmp.eq.s32.totalorder %s24, 0
      %p136 = por %p134, %p135
      %p137 = scmp.ne.s32.totalorder %s125, %s126
      %p138 = scmp.eq.s32.totalorder %s25, 1
      %p139 = por %p137, %p138
      %p141 = scmp.ne.s32.totalorder %s126, %s140
      %p142 = scmp.eq.s32.totalorder %s25, 0
      %p143 = por %p141, %p142
      %s144 = ssub.s32 %s26, %s38
      %p145 = scmp.eq.s32.totalorder %s144, 0
      %s147 = sadd.s32 %s146, 1
      %s148 = scalar_select %p145, %s146, %s147
      %p151 = pneg %p145
      %p152 = scmp.eq.s32.totalorder %s19, 1
      %p153 = por %p151, %p152
      %p154 = scmp.ne.s32.totalorder %s146, %s149
      %p155 = scmp.eq.s32.totalorder %s19, 0
      %p156 = por %p154, %p155
      %p157 = scmp.ne.s32.totalorder %s146, %s149
      %p158 = scmp.eq.s32.totalorder %s24, 1
      %p159 = por %p157, %p158
      %p160 = scmp.ne.s32.totalorder %s149, %s150
      %p161 = scmp.eq.s32.totalorder %s24, 0
      %p162 = por %p160, %p161
      %p163 = scmp.ne.s32.totalorder %s149, %s150
      %p164 = scmp.eq.s32.totalorder %s25, 1
      %p165 = por %p163, %p164
      %p167 = scmp.ne.s32.totalorder %s150, %s166
      %p168 = scmp.eq.s32.totalorder %s25, 0
      %p169 = por %p167, %p168
      %p170 = scmp.le.s32.totalorder 1, %s19
      %p171 = scmp.lt.s32.totalorder %s19, 3
      %p172 = pnand %p170, %p171
      %p173 = pneg %p172
      // Predicated region
      $region9: #{tpu_custom_call.1} parent=5 // pred_check
        _
      $region10: #{tpu_custom_call.1} parent=5 // pred_check_branch
        %175 = sbr.rel (%p172) target = $region12
      $region11: #{tpu_custom_call.1} parent=5 // pred_region
        %s176 = ssub.s32 %s19, 1
        // Predicated region
        $region13: #{tpu_custom_call.1} parent=11 // pred_check
          %p177 = pneg %p136
        $region14: #{tpu_custom_call.1} parent=11 // pred_check_branch
          %179 = sbr.rel (%p177) target = $region16
        $region15: #{tpu_custom_call.1} parent=11 // pred_region
          _
        $region16: #{tpu_custom_call.1} parent=11 // pred_fallthru
          _
      $region12: #{tpu_custom_call.1} parent=5 // pred_fallthru
        _
      %p180 = scmp.lt.s32.totalorder %s19, 2
      // Predicated region
      $region17: #{tpu_custom_call.1} parent=5 // pred_check
        %p181 = pneg %p180
      $region18: #{tpu_custom_call.1} parent=5 // pred_check_branch
        %183 = sbr.rel (%p181) target = $region20
      $region19: #{tpu_custom_call.1} parent=5 // pred_region
        // Predicated region
        $region21: #{tpu_custom_call.1} parent=19 // pred_check
          %p184 = pneg %p53
        $region22: #{tpu_custom_call.1} parent=19 // pred_check_branch
          %186 = sbr.rel (%p184) target = $region24
        $region23: #{tpu_custom_call.1} parent=19 // pred_region
          %s187 = sand.u32 %s43, 1
          %s188 = scalar_lea.sflag [#allocation3], %s187
          %s189 = sand.u32 %s43, 1
          %s190 = smul.addr %s189, 32
          %s191 = scalar_lea.vmem [#allocation2], %s190
          %s192 = smul.u32 8, %s27
          %s194 = ssub.s32 512, 512
          %195 = vsyncadd %s188, %s194
          %s196 = smul.addr %s26, 8
          %s197 = sadd.s32 %s192, %s196
          %s198 = smul.addr %s197, 64
          %s199 = scalar_lea.hbm %s0, %s198
          %s201 = sshll.u32 %s191, 4
          %s202 = int_to_ptr.vmem [resolvable:$true] %s201
          %204 = dma.hbm_to_vmem [thread:$0]  %s199, 512, %s202, %s188
        $region24: #{tpu_custom_call.1} parent=19 // pred_fallthru
          _
        // Predicated region
        $region25: #{tpu_custom_call.1} parent=19 // pred_check
          %p205 = pneg %p81
        $region26: #{tpu_custom_call.1} parent=19 // pred_check_branch
          %207 = sbr.rel (%p205) target = $region28
        $region27: #{tpu_custom_call.1} parent=19 // pred_region
          %s208 = sand.u32 %s19, 1
          %s209 = scalar_lea.sflag [#allocation6], %s208
          %s210 = sand.u32 %s71, 1
          %s211 = smul.addr %s210, 8
          %s212 = scalar_lea.vmem [#allocation5], %s211
          %s213 = smul.u32 8, %s27
          %s215 = ssub.s32 128, 128
          %216 = vsyncadd %s209, %s215
          %s217 = smul.addr %s26, 8
          %s218 = sadd.s32 %s213, %s217
          %s219 = smul.addr %s218, 16
          %s220 = scalar_lea.hbm %s1, %s219
          %s222 = sshll.u32 %s212, 4
          %s223 = int_to_ptr.vmem [resolvable:$true] %s222
          %225 = dma.hbm_to_vmem [thread:$0]  %s220, 128, %s223, %s209
        $region28: #{tpu_custom_call.1} parent=19 // pred_fallthru
          _
        // Predicated region
        $region29: #{tpu_custom_call.1} parent=19 // pred_check
          %p226 = pneg %p109
        $region30: #{tpu_custom_call.1} parent=19 // pred_check_branch
          %228 = sbr.rel (%p226) target = $region32
        $region31: #{tpu_custom_call.1} parent=19 // pred_region
          %s229 = sand.u32 %s19, 1
          %s230 = scalar_lea.sflag [#allocation6], %s229
          %s231 = sand.u32 %s99, 1
          %s232 = smul.addr %s231, 8
          %s233 = scalar_lea.vmem [#allocation7], %s232
          %s234 = smul.u32 8, %s27
          %s236 = ssub.s32 128, 128
          %237 = vsyncadd %s230, %s236
          %s238 = smul.addr %s26, 8
          %s239 = sadd.s32 %s234, %s238
          %s240 = smul.addr %s239, 16
          %s241 = scalar_lea.hbm %s2, %s240
          %s243 = sshll.u32 %s233, 4
          %s244 = int_to_ptr.vmem [resolvable:$true] %s243
          %246 = dma.hbm_to_vmem [thread:$0]  %s241, 128, %s244, %s230
        $region32: #{tpu_custom_call.1} parent=19 // pred_fallthru
          _
      $region20: #{tpu_custom_call.1} parent=5 // pred_fallthru
        _
      %p247 = scmp.le.s32.totalorder 1, %s19
      %p248 = scmp.lt.s32.totalorder %s19, 3
      %p249 = pnand %p247, %p248
      %p250 = pneg %p249
      // Predicated region
      $region33: #{tpu_custom_call.1} parent=5 // pred_check
        _
      $region34: #{tpu_custom_call.1} parent=5 // pred_check_branch
        %252 = sbr.rel (%p249) target = $region36
      $region35: #{tpu_custom_call.1} parent=5 // pred_region
        %s253 = ssub.s32 %s19, 1
        %s254 = sand.u32 %s46, 1
        %s255 = scalar_lea.sflag [#allocation3], %s254
        %s256 = sand.u32 %s46, 1
        %s257 = smul.addr %s256, 32
        %s258 = scalar_lea.vmem [#allocation2], %s257
        // Predicated region
        $region37: #{tpu_custom_call.1} parent=35 // pred_check
          %p259 = pneg %p59
        $region38: #{tpu_custom_call.1} parent=35 // pred_check_branch
          %261 = sbr.rel (%p259) target = $region40
        $region39: #{tpu_custom_call.1} parent=35 // pred_region
          %262 = dma.done %s255, 512
        $region40: #{tpu_custom_call.1} parent=35 // pred_fallthru
          _
        %s263 = sand.u32 %s24, 1
        %s264 = scalar_lea.sflag [#allocation6], %s263
        %s265 = sand.u32 %s74, 1
        %s266 = smul.addr %s265, 8
        %s267 = scalar_lea.vmem [#allocation5], %s266
        // Predicated region
        $region41: #{tpu_custom_call.1} parent=35 // pred_check
          %p268 = pneg %p87
        $region42: #{tpu_custom_call.1} parent=35 // pred_check_branch
          %270 = sbr.rel (%p268) target = $region44
        $region43: #{tpu_custom_call.1} parent=35 // pred_region
          %271 = dma.done %s264, 128
        $region44: #{tpu_custom_call.1} parent=35 // pred_fallthru
          _
        %s272 = sand.u32 %s24, 1
        %s273 = scalar_lea.sflag [#allocation6], %s272
        %s274 = sand.u32 %s102, 1
        %s275 = smul.addr %s274, 8
        %s276 = scalar_lea.vmem [#allocation7], %s275
        // Predicated region
        $region45: #{tpu_custom_call.1} parent=35 // pred_check
          %p277 = pneg %p115
        $region46: #{tpu_custom_call.1} parent=35 // pred_check_branch
          %279 = sbr.rel (%p277) target = $region48
        $region47: #{tpu_custom_call.1} parent=35 // pred_region
          %280 = dma.done %s273, 128
        $region48: #{tpu_custom_call.1} parent=35 // pred_fallthru
          _
        %s281 = sand.u32 %s46, 1
        %s282 = scalar_lea.sflag [#allocation3], %s281
        %s283 = sand.u32 %s46, 1
        %s284 = smul.addr %s283, 32
        %s285 = scalar_lea.vmem [#allocation2], %s284
        %p286 = pneg %p59
        %p287 = pneg %p56
        %s288 = sand.u32 %s24, 1
        %s289 = scalar_lea.sflag [#allocation6], %s288
        %s290 = sand.u32 %s74, 1
        %s291 = smul.addr %s290, 8
        %s292 = scalar_lea.vmem [#allocation5], %s291
        %p293 = pneg %p87
        %p294 = pneg %p84
        %s295 = sand.u32 %s24, 1
        %s296 = scalar_lea.sflag [#allocation6], %s295
        %s297 = sand.u32 %s102, 1
        %s298 = smul.addr %s297, 8
        %s299 = scalar_lea.vmem [#allocation7], %s298
        %p300 = pneg %p115
        %p301 = pneg %p112
        %p302 = pneg %p136
        %p303 = pneg %p133
        %p304 = pneg %p162
        %p305 = pneg %p159
        %s306 = sand.u32 %s149, 1
        %s307 = scalar_lea.sflag [#allocation4], %s306
        %s308 = sand.u32 %s149, 1
        %s309 = smul.addr %s308, 8
        %s310 = scalar_lea.vmem [#allocation8], %s309
        %s311 = smul.u32 8, %s29
        %s312 = smul.u32 8, %s29
        %s313 = smul.u32 8, %s29
        %p314 = scmp.eq.s32.totalorder %s29, 0
        // Predicated region
        $region49: #{tpu_custom_call.1} parent=35 // pred_check
          %p315 = pneg %p314
        $region50: #{tpu_custom_call.1} parent=35 // pred_check_branch
          %317 = sbr.rel (%p315) target = $region52
        $region51: #{tpu_custom_call.1} parent=35 // pred_region
          %318 = vst [vmem:[%s310] sm:$0xff] 0.0
        $region52: #{tpu_custom_call.1} parent=35 // pred_fallthru
          _
        %v319 = vld [vmem:[%s258] sm:$0xff]
        %v320 = vld [vmem:[%s258 + $0x8] sm:$0xff]
        %v321 = vld [vmem:[%s258 + $0x10] sm:$0xff]
        %v322 = vld [vmem:[%s258 + $0x18] sm:$0xff]
        %v327 = vcombine.high %v319, %v319
        %v328 = vcombine.high %v320, %v320
        %v329 = vcombine.high %v321, %v321
        %v330 = vcombine.high %v322, %v322
        %vm335 = vcmask 1043456
        %v336 = vsel %vm335, %v319, -inf
        %v337 = vrot.slane %v336, 4
        %v338 = vmax.f32 %v336, %v337
        %v339 = vrot.slane %v338, 2
        %v340 = vmax.f32 %v338, %v339
        %v341 = vrot.slane %v340, 1
        %v342 = vmax.f32 %v340, %v341
        %v343 = vsel %vm335, %v327, -inf
        %v344 = vrot.slane %v343, 4
        %v345 = vmax.f32 %v343, %v344
        %v346 = vrot.slane %v345, 2
        %v347 = vmax.f32 %v345, %v346
        %v348 = vrot.slane %v347, 1
        %v349 = vmax.f32 %v347, %v348
        %v350 = vsel %vm335, %v320, -inf
        %v351 = vrot.slane %v350, 4
        %v352 = vmax.f32 %v350, %v351
        %v353 = vrot.slane %v352, 2
        %v354 = vmax.f32 %v352, %v353
        %v355 = vrot.slane %v354, 1
        %v356 = vmax.f32 %v354, %v355
        %v357 = vsel %vm335, %v328, -inf
        %v358 = vrot.slane %v357, 4
        %v359 = vmax.f32 %v357, %v358
        %v360 = vrot.slane %v359, 2
        %v361 = vmax.f32 %v359, %v360
        %v362 = vrot.slane %v361, 1
        %v363 = vmax.f32 %v361, %v362
        %v364 = vsel %vm335, %v321, -inf
        %v365 = vrot.slane %v364, 4
        %v366 = vmax.f32 %v364, %v365
        %v367 = vrot.slane %v366, 2
        %v368 = vmax.f32 %v366, %v367
        %v369 = vrot.slane %v368, 1
        %v370 = vmax.f32 %v368, %v369
        %v371 = vsel %vm335, %v329, -inf
        %v372 = vrot.slane %v371, 4
        %v373 = vmax.f32 %v371, %v372
        %v374 = vrot.slane %v373, 2
        %v375 = vmax.f32 %v373, %v374
        %v376 = vrot.slane %v375, 1
        %v377 = vmax.f32 %v375, %v376
        %v378 = vsel %vm335, %v322, -inf
        %v379 = vrot.slane %v378, 4
        %v380 = vmax.f32 %v378, %v379
        %v381 = vrot.slane %v380, 2
        %v382 = vmax.f32 %v380, %v381
        %v383 = vrot.slane %v382, 1
        %v384 = vmax.f32 %v382, %v383
        %v385 = vsel %vm335, %v330, -inf
        %v386 = vrot.slane %v385, 4
        %v387 = vmax.f32 %v385, %v386
        %v388 = vrot.slane %v387, 2
        %v389 = vmax.f32 %v387, %v388
        %v390 = vrot.slane %v389, 1
        %v391 = vmax.f32 %v389, %v390
        %v400 = vcombine.low %v342, %v349
        %v401 = vcombine.low %v356, %v363
        %v402 = vcombine.low %v370, %v377
        %v403 = vcombine.low %v384, %v391
        %v408 = vsub.f32 %v319, %v400
        %v409 = vsub.f32 %v320, %v401
        %v410 = vsub.f32 %v321, %v402
        %v411 = vsub.f32 %v322, %v403
        %v412 = vmul.f32 %v408, 1.442695
        %v413 = vpow.pop %v412
        %v414 = vmul.f32 %v409, 1.442695
        %v415 = vpow.pop %v414
        %v416 = vmul.f32 %v410, 1.442695
        %v417 = vpow.pop %v416
        %v418 = vmul.f32 %v411, 1.442695
        %v419 = vpow.pop %v418
        %v424 = vcombine.high %v413, %v413
        %v425 = vcombine.high %v415, %v415
        %v426 = vcombine.high %v417, %v417
        %v427 = vcombine.high %v419, %v419
        %v432 = vsel %vm335, %v413, 0.0
        %v433 = vrot.slane %v432, 4
        %v434 = vadd.f32 %v432, %v433
        %v435 = vrot.slane %v434, 2
        %v436 = vadd.f32 %v434, %v435
        %v437 = vrot.slane %v436, 1
        %v438 = vadd.f32 %v436, %v437
        %v439 = vsel %vm335, %v424, 0.0
        %v440 = vrot.slane %v439, 4
        %v441 = vadd.f32 %v439, %v440
        %v442 = vrot.slane %v441, 2
        %v443 = vadd.f32 %v441, %v442
        %v444 = vrot.slane %v443, 1
        %v445 = vadd.f32 %v443, %v444
        %v446 = vsel %vm335, %v415, 0.0
        %v447 = vrot.slane %v446, 4
        %v448 = vadd.f32 %v446, %v447
        %v449 = vrot.slane %v448, 2
        %v450 = vadd.f32 %v448, %v449
        %v451 = vrot.slane %v450, 1
        %v452 = vadd.f32 %v450, %v451
        %v453 = vsel %vm335, %v425, 0.0
        %v454 = vrot.slane %v453, 4
        %v455 = vadd.f32 %v453, %v454
        %v456 = vrot.slane %v455, 2
        %v457 = vadd.f32 %v455, %v456
        %v458 = vrot.slane %v457, 1
        %v459 = vadd.f32 %v457, %v458
        %v460 = vsel %vm335, %v417, 0.0
        %v461 = vrot.slane %v460, 4
        %v462 = vadd.f32 %v460, %v461
        %v463 = vrot.slane %v462, 2
        %v464 = vadd.f32 %v462, %v463
        %v465 = vrot.slane %v464, 1
        %v466 = vadd.f32 %v464, %v465
        %v467 = vsel %vm335, %v426, 0.0
        %v468 = vrot.slane %v467, 4
        %v469 = vadd.f32 %v467, %v468
        %v470 = vrot.slane %v469, 2
        %v471 = vadd.f32 %v469, %v470
        %v472 = vrot.slane %v471, 1
        %v473 = vadd.f32 %v471, %v472
        %v474 = vsel %vm335, %v419, 0.0
        %v475 = vrot.slane %v474, 4
        %v476 = vadd.f32 %v474, %v475
        %v477 = vrot.slane %v476, 2
        %v478 = vadd.f32 %v476, %v477
        %v479 = vrot.slane %v478, 1
        %v480 = vadd.f32 %v478, %v479
        %v481 = vsel %vm335, %v427, 0.0
        %v482 = vrot.slane %v481, 4
        %v483 = vadd.f32 %v481, %v482
        %v484 = vrot.slane %v483, 2
        %v485 = vadd.f32 %v483, %v484
        %v486 = vrot.slane %v485, 1
        %v487 = vadd.f32 %v485, %v486
        %v488 = vlog2.pop %v438
        %v489 = vmul.f32 %v488, 0.6931472
        %v490 = vlog2.pop %v445
        %v491 = vmul.f32 %v490, 0.6931472
        %v492 = vlog2.pop %v452
        %v493 = vmul.f32 %v492, 0.6931472
        %v494 = vlog2.pop %v459
        %v495 = vmul.f32 %v494, 0.6931472
        %v496 = vlog2.pop %v466
        %v497 = vmul.f32 %v496, 0.6931472
        %v498 = vlog2.pop %v473
        %v499 = vmul.f32 %v498, 0.6931472
        %v500 = vlog2.pop %v480
        %v501 = vmul.f32 %v500, 0.6931472
        %v502 = vlog2.pop %v487
        %v503 = vmul.f32 %v502, 0.6931472
        %v504 = vadd.f32 %v342, %v489
        %v505 = vadd.f32 %v349, %v491
        %v506 = vadd.f32 %v356, %v493
        %v507 = vadd.f32 %v363, %v495
        %v508 = vadd.f32 %v370, %v497
        %v509 = vadd.f32 %v377, %v499
        %v510 = vadd.f32 %v384, %v501
        %v511 = vadd.f32 %v391, %v503
        %v512 = vld [vmem:[%s267] sm:$0xff]
        %v513 = vlaneseq
        %v514 = vshrl.u32 %v513, 7
        %v515 = vlaneseq
        %v516 = vshrl.u32 %v515, 7
        %v517 = vsub.s32 0, %v516
        %v518 = vrot.slane %v512, %v517
        %v519 = vlaneseq
        %v520 = vshrl.u32 %v519, 7
        %v521 = vsub.s32 1, %v520
        %v522 = vrot.slane %v512, %v521
        %v523 = vlaneseq
        %v524 = vshrl.u32 %v523, 7
        %v525 = vsub.s32 2, %v524
        %v526 = vrot.slane %v512, %v525
        %v527 = vlaneseq
        %v528 = vshrl.u32 %v527, 7
        %v529 = vsub.s32 3, %v528
        %v530 = vrot.slane %v512, %v529
        %v531 = vlaneseq
        %v532 = vshrl.u32 %v531, 7
        %v533 = vsub.s32 4, %v532
        %v534 = vrot.slane %v512, %v533
        %v535 = vlaneseq
        %v536 = vshrl.u32 %v535, 7
        %v537 = vsub.s32 5, %v536
        %v538 = vrot.slane %v512, %v537
        %v539 = vlaneseq
        %v540 = vshrl.u32 %v539, 7
        %v541 = vsub.s32 6, %v540
        %v542 = vrot.slane %v512, %v541
        %v543 = vlaneseq
        %v544 = vshrl.u32 %v543, 7
        %v545 = vsub.s32 7, %v544
        %v546 = vrot.slane %v512, %v545
        %vm547 = vcmp.eq.s32.totalorder %v514, %v518
        %vm548 = vcmp.eq.s32.totalorder %v514, %v522
        %vm549 = vcmp.eq.s32.totalorder %v514, %v526
        %vm550 = vcmp.eq.s32.totalorder %v514, %v530
        %vm551 = vcmp.eq.s32.totalorder %v514, %v534
        %vm552 = vcmp.eq.s32.totalorder %v514, %v538
        %vm553 = vcmp.eq.s32.totalorder %v514, %v542
        %vm554 = vcmp.eq.s32.totalorder %v514, %v546
        %v555 = vsub.f32 %v504, %v319
        %v556 = vsub.f32 %v505, %v327
        %v557 = vsub.f32 %v506, %v320
        %v558 = vsub.f32 %v507, %v328
        %v559 = vsub.f32 %v508, %v321
        %v560 = vsub.f32 %v509, %v329
        %v561 = vsub.f32 %v510, %v322
        %v562 = vsub.f32 %v511, %v330
        %v563 = vld [vmem:[%s3] sm:$0xf]
        %565 = vset.pattern.permute.xlu0 0
        %566 = vperm.xlu0 %565, %v563
        %v567 = vpop.permute.xlu0 %566
        %v569 = vmul.f32 %v567, %v555
        %v570 = vmul.f32 %v567, %v556
        %v571 = vmul.f32 %v567, %v557
        %v572 = vmul.f32 %v567, %v558
        %v573 = vmul.f32 %v567, %v559
        %v574 = vmul.f32 %v567, %v560
        %v575 = vmul.f32 %v567, %v561
        %v576 = vmul.f32 %v567, %v562
        %v577 = vsel %vm547, %v569, 0.0
        %v578 = vsel %vm548, %v570, 0.0
        %v579 = vsel %vm549, %v571, 0.0
        %v580 = vsel %vm550, %v572, 0.0
        %v581 = vsel %vm551, %v573, 0.0
        %v582 = vsel %vm552, %v574, 0.0
        %v583 = vsel %vm553, %v575, 0.0
        %v584 = vsel %vm554, %v576, 0.0
        %v585 = vld [vmem:[%s276] sm:$0xff]
        %v586 = vsel %vm335, %v577, 0.0
        %v587 = vrot.slane %v586, 4
        %v588 = vadd.f32 %v586, %v587
        %v589 = vrot.slane %v588, 2
        %v590 = vadd.f32 %v588, %v589
        %v591 = vrot.slane %v590, 1
        %v592 = vadd.f32 %v590, %v591
        %v593 = vsel %vm335, %v578, 0.0
        %v594 = vrot.slane %v593, 4
        %v595 = vadd.f32 %v593, %v594
        %v596 = vrot.slane %v595, 2
        %v597 = vadd.f32 %v595, %v596
        %v598 = vrot.slane %v597, 1
        %v599 = vadd.f32 %v597, %v598
        %v600 = vsel %vm335, %v579, 0.0
        %v601 = vrot.slane %v600, 4
        %v602 = vadd.f32 %v600, %v601
        %v603 = vrot.slane %v602, 2
        %v604 = vadd.f32 %v602, %v603
        %v605 = vrot.slane %v604, 1
        %v606 = vadd.f32 %v604, %v605
        %v607 = vsel %vm335, %v580, 0.0
        %v608 = vrot.slane %v607, 4
        %v609 = vadd.f32 %v607, %v608
        %v610 = vrot.slane %v609, 2
        %v611 = vadd.f32 %v609, %v610
        %v612 = vrot.slane %v611, 1
        %v613 = vadd.f32 %v611, %v612
        %v614 = vsel %vm335, %v581, 0.0
        %v615 = vrot.slane %v614, 4
        %v616 = vadd.f32 %v614, %v615
        %v617 = vrot.slane %v616, 2
        %v618 = vadd.f32 %v616, %v617
        %v619 = vrot.slane %v618, 1
        %v620 = vadd.f32 %v618, %v619
        %v621 = vsel %vm335, %v582, 0.0
        %v622 = vrot.slane %v621, 4
        %v623 = vadd.f32 %v621, %v622
        %v624 = vrot.slane %v623, 2
        %v625 = vadd.f32 %v623, %v624
        %v626 = vrot.slane %v625, 1
        %v627 = vadd.f32 %v625, %v626
        %v628 = vsel %vm335, %v583, 0.0
        %v629 = vrot.slane %v628, 4
        %v630 = vadd.f32 %v628, %v629
        %v631 = vrot.slane %v630, 2
        %v632 = vadd.f32 %v630, %v631
        %v633 = vrot.slane %v632, 1
        %v634 = vadd.f32 %v632, %v633
        %v635 = vsel %vm335, %v584, 0.0
        %v636 = vrot.slane %v635, 4
        %v637 = vadd.f32 %v635, %v636
        %v638 = vrot.slane %v637, 2
        %v639 = vadd.f32 %v637, %v638
        %v640 = vrot.slane %v639, 1
        %v641 = vadd.f32 %v639, %v640
        %v650 = vcombine.low %v592, %v599
        %v651 = vcombine.low %v606, %v613
        %v652 = vcombine.low %v620, %v627
        %v653 = vcombine.low %v634, %v641
        %v655 = vunpack.c.l.s4 1966171168
        %v656 = vunpack.c.0.s8 %v655
        %v657 = vlaneseq
        %v658 = vshrl.u32 %v657, 7
        %v659 = vsub.s32 %v656, %v658
        %v660 = vrot.slane %v650, %v659
        %v662 = vunpack.c.l.s4 1966171168
        %v663 = vunpack.c.0.s8 %v662
        %v664 = vlaneseq
        %v665 = vshrl.u32 %v664, 7
        %v666 = vsub.s32 %v663, %v665
        %v667 = vrot.slane %v651, %v666
        %v669 = vunpack.c.l.s4 1966171168
        %v670 = vunpack.c.0.s8 %v669
        %v671 = vlaneseq
        %v672 = vshrl.u32 %v671, 7
        %v673 = vsub.s32 %v670, %v672
        %v674 = vrot.slane %v652, %v673
        %v676 = vunpack.c.l.s4 1966171168
        %v677 = vunpack.c.0.s8 %v676
        %v678 = vlaneseq
        %v679 = vshrl.u32 %v678, 7
        %v680 = vsub.s32 %v677, %v679
        %v681 = vrot.slane %v653, %v680
        %v682 = vcombine.low %v660, %v667
        %v683 = vcombine.low %v674, %v681
        %v685 = vunpack.c.l.s4 1966171168
        %v686 = vunpack.c.0.s8 %v685
        %v687 = vlaneseq
        %v688 = vshrl.u32 %v687, 7
        %v689 = vsub.s32 %v686, %v688
        %v690 = vrot.slane %v682, %v689
        %v692 = vunpack.c.l.s4 1966171168
        %v693 = vunpack.c.0.s8 %v692
        %v694 = vlaneseq
        %v695 = vshrl.u32 %v694, 7
        %v696 = vsub.s32 %v693, %v695
        %v697 = vrot.slane %v683, %v696
        %v698 = vcombine.low %v690, %v697
        %v700 = vmul.f32 %v585, %v698
        %v701 = vld [vmem:[%s310] sm:$0xff]
        %v702 = vadd.f32 %v701, %v700
        %703 = vst [vmem:[%s310] sm:$0xff] %v702
        %s704 = sand.u32 %s149, 1
        %s705 = scalar_lea.sflag [#allocation4], %s704
        %s706 = sand.u32 %s149, 1
        %s707 = smul.addr %s706, 8
        %s708 = scalar_lea.vmem [#allocation8], %s707
        // Predicated region
        $region53: #{tpu_custom_call.1} parent=35 // pred_check
          %p709 = pneg %p159
        $region54: #{tpu_custom_call.1} parent=35 // pred_check_branch
          %711 = sbr.rel (%p709) target = $region56
        $region55: #{tpu_custom_call.1} parent=35 // pred_region
          %s713 = ssub.s32 128, 128
          %714 = vsyncadd %s705, %s713
          %s715 = smul.addr %s28, 8
          %s716 = smul.addr %s715, 16
          %s717 = scalar_lea.hbm %s4, %s716
          %s719 = sshll.u32 %s708, 4
          %s720 = int_to_ptr.vmem [resolvable:$true] %s719
          %722 = dma.vmem_to_hbm [thread:$0]  %s720, 128, %s717, %s705
        $region56: #{tpu_custom_call.1} parent=35 // pred_fallthru
          _
      $region36: #{tpu_custom_call.1} parent=5 // pred_fallthru
        _
      %p723 = scmp.le.s32.totalorder 2, %s19
      // Predicated region
      $region57: #{tpu_custom_call.1} parent=5 // pred_check
        %p724 = pneg %p723
      $region58: #{tpu_custom_call.1} parent=5 // pred_check_branch
        %726 = sbr.rel (%p724) target = $region60
      $region59: #{tpu_custom_call.1} parent=5 // pred_region
        %s727 = ssub.s32 %s19, 2
        // Predicated region
        $region61: #{tpu_custom_call.1} parent=59 // pred_check
          %p728 = pneg %p165
        $region62: #{tpu_custom_call.1} parent=59 // pred_check_branch
          %730 = sbr.rel (%p728) target = $region64
        $region63: #{tpu_custom_call.1} parent=59 // pred_region
          %s731 = sand.u32 %s150, 1
          %s732 = scalar_lea.sflag [#allocation4], %s731
          %s733 = sand.u32 %s150, 1
          %s734 = smul.addr %s733, 8
          %s735 = scalar_lea.vmem [#allocation8], %s734
          %736 = dma.done %s732, 128
        $region64: #{tpu_custom_call.1} parent=59 // pred_fallthru
          _
      $region60: #{tpu_custom_call.1} parent=5 // pred_fallthru
        _
    $region6: #{tpu_custom_call.1} parent=1 // loop_footer
      %s23 = sadd.s32 1, %s19
    $region7: #{tpu_custom_call.1} parent=1 // loop_footer_branch
      %18 = sbr.rel target = $region3
    $region8: #{tpu_custom_call.1} parent=1 // loop_exit
      _
    %737 = vsyncpa [#allocation3], 1
    %s738 = scalar_lea.sflag [#allocation3], 1
    %739 = vsyncpa %s738, 1
    %740 = vsyncpa [#allocation6], 1
    %s741 = scalar_lea.sflag [#allocation6], 1
    %742 = vsyncpa %s741, 1
    %743 = vsyncpa [#allocation4], 1
    %s744 = scalar_lea.sflag [#allocation4], 1
    %745 = vsyncpa %s744, 1

</llo_original>
